<compile_context>
chip_gen: v7x
topology: tpu7x:2x2x1
jax: 0.10.0
libtpu: 0.0.40
codegen_flags: <defaults>
</compile_context>

<pallas_src>
import jax
import jax.numpy as jnp
from jax.experimental import pallas as pl
from jax.experimental.pallas import tpu as pltpu


def _round_up(x, m):
    return (x + m - 1) // m * m


def clip_adapter_kernel(img_ref, wv_ref, txt_t_ref, out_ref, acc_ref):
    # TODO(synk): the real clip_model.visual transformer is replaced by a
    # single linear projection; only projection + L2-normalize + sim-logits
    # are computed here.
    f = pl.program_id(1)

    @pl.when(f == 0)
    def _():
        acc_ref[...] = jnp.zeros_like(acc_ref)

    # Partial contraction over the flattened image features
    # (bf16 MXU feed, f32 accumulation).
    acc_ref[...] += jnp.dot(img_ref[...], wv_ref[...],
                            preferred_element_type=jnp.float32)

    @pl.when(f == pl.num_programs(1) - 1)
    def _():
        feats = acc_ref[...]                                  # [TM, D_pad]
        sq = jnp.sum(feats * feats, axis=-1, keepdims=True)   # [TM, 1]
        # Temperature (=100) folded into the row scale; rsqrt goes to the EUP.
        # The tiny eps only guards the all-zero padded rows (PyTorch's
        # x / x.norm() has the same divide-by-zero hazard for real rows).
        scale = 100.0 * jax.lax.rsqrt(sq + 1e-12)
        out_ref[...] = jnp.dot(scale * feats, txt_t_ref[...],
                               preferred_element_type=jnp.float32)


def clip_adapter_forward(image_nchw, w_visual, text_features,
                         *, tile_m=128, tile_f=512):
    """image_nchw: [B, C, H, W]; w_visual: [C*H*W, D]; text_features: [K, D]."""
    B = image_nchw.shape[0]
    img_flat = image_nchw.reshape(B, -1)
    F_dim = img_flat.shape[1]
    D = w_visual.shape[1]
    K = text_features.shape[0]

    # Tile sizes: sublane-aligned rows, lane-aligned (128) feature/class dims.
    TM = min(tile_m, _round_up(B, 8))
    TF = min(tile_f, _round_up(F_dim, 128))
    B_pad = _round_up(B, TM)
    F_pad = _round_up(F_dim, TF)
    D_pad = _round_up(D, 128)
    K_pad = _round_up(K, 128)

    # Pad + cast streaming operands to bf16; pre-transpose the text features
    # to [D_pad, K_pad] so the kernel never transposes and stores lane-dense.
    img_p = jnp.zeros((B_pad, F_pad), jnp.bfloat16).at[:B, :F_dim].set(
        img_flat.astype(jnp.bfloat16))
    wv_p = jnp.zeros((F_pad, D_pad), jnp.bfloat16).at[:F_dim, :D].set(
        w_visual.astype(jnp.bfloat16))
    txt_t_p = jnp.zeros((D_pad, K_pad), jnp.float32).at[:D, :K].set(
        text_features.astype(jnp.float32).T)

    grid = (B_pad // TM, F_pad // TF)

    cost = pl.CostEstimate(
        flops=2 * B_pad * F_pad * D_pad + 2 * B_pad * D_pad * K_pad,
        transcendentals=B_pad,
        bytes_accessed=(img_p.size * 2 + wv_p.size * 2
                        + txt_t_p.size * 4 + B_pad * K_pad * 4),
    )

    out_padded = pl.pallas_call(
        clip_adapter_kernel,
        out_shape=jax.ShapeDtypeStruct((B_pad, K_pad), jnp.float32),
        grid_spec=pltpu.PrefetchScalarGridSpec(
            num_scalar_prefetch=0,
            grid=grid,
            in_specs=[
                pl.BlockSpec((TM, TF), lambda i, f: (i, f)),        # image tile
                pl.BlockSpec((TF, D_pad), lambda i, f: (f, 0)),     # visual W
                pl.BlockSpec((D_pad, K_pad), lambda i, f: (0, 0)),  # text^T
            ],
            out_specs=pl.BlockSpec((TM, K_pad), lambda i, f: (i, 0)),
            scratch_shapes=[pltpu.VMEM((TM, D_pad), jnp.float32)],
        ),
        compiler_params=pltpu.CompilerParams(
            dimension_semantics=("parallel", "arbitrary"),
            vmem_limit_bytes=32 * 1024 * 1024,
        ),
        cost_estimate=cost,
    )(img_p, wv_p, txt_t_p)

    return out_padded[:B, :K]


if __name__ == "__main__":
    key = jax.random.PRNGKey(0)
    k1, k2, k3 = jax.random.split(key, 3)

    B, C, H, W = 2, 4, 16, 16     # image batch / channels / spatial
    D = 32                        # CLIP embedding dim (small synthetic)
    K = 8                         # number of text classes (len(text))

    image = jax.random.normal(k1, (B, C, H, W), jnp.float32)
    # Deterministic stand-in weights for clip_model.visual (linear projection).
    w_visual = jax.random.normal(k2, (C * H * W, D), jnp.float32) * 0.02
    # Deterministic stand-in for prompt_learner output (already L2-normalized,
    # as the freeseg prompt learner produces).
    txt = jax.random.normal(k3, (K, D), jnp.float32)
    txt = txt / jnp.linalg.norm(txt, axis=-1, keepdims=True)

    logits = clip_adapter_forward(image, w_visual, txt)
    jax.block_until_ready(logits)

    # Pure-JAX reference with the same bf16 feed / f32 accumulation as the
    # kernel's encoder stand-in matmul.
    feats = jnp.dot(image.reshape(B, -1).astype(jnp.bfloat16),
                    w_visual.astype(jnp.bfloat16),
                    preferred_element_type=jnp.float32)
    feats = feats / jnp.linalg.norm(feats, axis=-1, keepdims=True)
    ref = 100.0 * feats @ txt.T

    assert logits.shape == (B, K)
    assert jnp.allclose(logits, ref, atol=5e-2, rtol=5e-3), "mismatch vs reference"

    print("KERNEL_OK")
</pallas_src>

<mosaic_0001>
module attributes {stable_mosaic.version = 11 : i64} {
  func.func @clip_adapter_kernel(%arg0: i32, %arg1: i32, %arg2: memref<8x512xbf16, #tpu.memory_space<vmem>>, %arg3: memref<512x128xbf16, #tpu.memory_space<vmem>>, %arg4: memref<128x128xf32, #tpu.memory_space<vmem>>, %arg5: memref<8x128xf32, #tpu.memory_space<vmem>>, %arg6: memref<8x128xf32, #tpu.memory_space<vmem>>) attributes {dimension_semantics = [#tpu.dimension_semantics<parallel>, #tpu.dimension_semantics<arbitrary>], iteration_bounds = array<i64: 1, 2>, scalar_prefetch = 0 : i64, scratch_operands = 1 : i64, tpu.core_type = #tpu.core_type<tc>, window_params = [{transform_indices = @transform_0, window_bounds = array<i64: 8, 512>}, {transform_indices = @transform_1, window_bounds = array<i64: 512, 128>}, {pipeline_mode = #tpu.pipeline_mode<synchronous>, transform_indices = @transform_2, window_bounds = array<i64: 128, 128>}, {transform_indices = @transform_3, window_bounds = array<i64: 8, 128>}]} {
    %c0_i32 = arith.constant 0 : i32
    %0 = arith.cmpi eq, %arg1, %c0_i32 : i32
    %1 = arith.extui %0 : i1 to i32
    %c0_i32_0 = arith.constant 0 : i32
    %2 = arith.cmpi ne, %1, %c0_i32_0 : i32
    scf.if %2 {
      %cst_9 = arith.constant 0.000000e+00 : f32
      %12 = vector.broadcast %cst_9 : f32 to vector<8x128xf32>
      %c0_10 = arith.constant 0 : index
      %c0_11 = arith.constant 0 : index
      %13 = vector.load %arg6[%c0_10, %c0_11] : memref<8x128xf32, #tpu.memory_space<vmem>>, vector<8x128xf32>
      tpu.vector_store %arg6[%c0_10, %c0_11], %12 {strides = array<i32>} : memref<8x128xf32, #tpu.memory_space<vmem>>, vector<8x128xf32>,
    } else {
    }
    %c0 = arith.constant 0 : index
    %c0_1 = arith.constant 0 : index
    %3 = vector.load %arg6[%c0, %c0_1] : memref<8x128xf32, #tpu.memory_space<vmem>>, vector<8x128xf32>
    %c0_2 = arith.constant 0 : index
    %c0_3 = arith.constant 0 : index
    %4 = vector.load %arg2[%c0_2, %c0_3] : memref<8x512xbf16, #tpu.memory_space<vmem>>, vector<8x512xbf16>
    %c0_4 = arith.constant 0 : index
    %c0_5 = arith.constant 0 : index
    %5 = vector.load %arg3[%c0_4, %c0_5] : memref<512x128xbf16, #tpu.memory_space<vmem>>, vector<512x128xbf16>
    %cst = arith.constant dense<0.000000e+00> : vector<8x128xf32>
    %6 = tpu.matmul %4, %5, %cst {dimension_numbers = #tpu.dot_dimension_numbers<[1], [0], [0], [1], [0, 0, 1, 1], [], []>} : vector<8x512xbf16>, vector<512x128xbf16>, vector<8x128xf32> -> vector<8x128xf32>
    %7 = arith.addf %3, %6 : vector<8x128xf32>
    %c0_6 = arith.constant 0 : index
    %c0_7 = arith.constant 0 : index
    %8 = vector.load %arg6[%c0_6, %c0_7] : memref<8x128xf32, #tpu.memory_space<vmem>>, vector<8x128xf32>
    tpu.vector_store %arg6[%c0_6, %c0_7], %7 {strides = array<i32>} : memref<8x128xf32, #tpu.memory_space<vmem>>, vector<8x128xf32>,
    %c1_i32 = arith.constant 1 : i32
    %9 = arith.cmpi eq, %arg1, %c1_i32 : i32
    %10 = arith.extui %9 : i1 to i32
    %c0_i32_8 = arith.constant 0 : i32
    %11 = arith.cmpi ne, %10, %c0_i32_8 : i32
    scf.if %11 {
      %c0_9 = arith.constant 0 : index
      %c0_10 = arith.constant 0 : index
      %12 = vector.load %arg6[%c0_9, %c0_10] : memref<8x128xf32, #tpu.memory_space<vmem>>, vector<8x128xf32>
      %13 = arith.mulf %12, %12 : vector<8x128xf32>
      %cst_11 = arith.constant dense<0.000000e+00> : vector<8xf32>
      %14 = vector.multi_reduction <add>, %13, %cst_11 [1] : vector<8x128xf32> to vector<8xf32>
      %15 = vector.shape_cast %14 : vector<8xf32> to vector<8x1xf32>
      %cst_12 = arith.constant 9.99999996E-13 : f32
      %16 = vector.broadcast %cst_12 : f32 to vector<8x1xf32>
      %17 = arith.addf %15, %16 : vector<8x1xf32>
      %18 = math.rsqrt %17 : vector<8x1xf32>
      %cst_13 = arith.constant 1.000000e+02 : f32
      %19 = vector.broadcast %cst_13 : f32 to vector<8x1xf32>
      %20 = arith.mulf %19, %18 : vector<8x1xf32>
      %21 = vector.broadcast %20 : vector<8x1xf32> to vector<8x128xf32>
      %22 = arith.mulf %21, %12 : vector<8x128xf32>
      %c0_14 = arith.constant 0 : index
      %c0_15 = arith.constant 0 : index
      %23 = vector.load %arg4[%c0_14, %c0_15] : memref<128x128xf32, #tpu.memory_space<vmem>>, vector<128x128xf32>
      %cst_16 = arith.constant dense<0.000000e+00> : vector<8x128xf32>
      %24 = tpu.matmul %22, %23, %cst_16 {dimension_numbers = #tpu.dot_dimension_numbers<[1], [0], [0], [1], [0, 0, 1, 1], [], []>} : vector<8x128xf32>, vector<128x128xf32>, vector<8x128xf32> -> vector<8x128xf32>
      %c0_17 = arith.constant 0 : index
      %c0_18 = arith.constant 0 : index
      %25 = vector.load %arg5[%c0_17, %c0_18] : memref<8x128xf32, #tpu.memory_space<vmem>>, vector<8x128xf32>
      tpu.vector_store %arg5[%c0_17, %c0_18], %24 {strides = array<i32>} : memref<8x128xf32, #tpu.memory_space<vmem>>, vector<8x128xf32>,
    } else {
    }
    return
  }
  func.func @transform_0(%arg0: i32, %arg1: i32) -> (i32, i32) {
    %c0_i32 = arith.constant 0 : i32
    return %arg0, %arg1 : i32, i32
  }
  func.func @transform_1(%arg0: i32, %arg1: i32) -> (i32, i32) {
    %c0_i32 = arith.constant 0 : i32
    %c0_i32_0 = arith.constant 0 : i32
    return %arg1, %c0_i32 : i32, i32
  }
  func.func @transform_2(%arg0: i32, %arg1: i32) -> (i32, i32) {
    %c0_i32 = arith.constant 0 : i32
    %c0_i32_0 = arith.constant 0 : i32
    %c0_i32_1 = arith.constant 0 : i32
    return %c0_i32, %c0_i32_0 : i32, i32
  }
  func.func @transform_3(%arg0: i32, %arg1: i32) -> (i32, i32) {
    %c0_i32 = arith.constant 0 : i32
    %c0_i32_0 = arith.constant 0 : i32
    return %arg0, %c0_i32 : i32, i32
  }
}

</mosaic_0001>

<llo_original>
// kernel: tpu_custom_call.1
$region0: #{tpu_custom_call.1}
  #allocation0 [shape = 'u32[]', space=smem, size = 0x4, offset = 0x4, fixed_abs, tag = 'smem constant byte address 0x4 - core index']
  #allocation1 [shape = 'u32[144,128]{1,0:T(1,128)}', space=vmem, size = 0x12000, scoped, tag = 'internal scratch']
  #allocation2 [shape = 'f32[8,128]{1,0:T(8,128)}', space=vmem, size = 0x1000, scoped, tag = 'scratch operand']
  %s0 = inlined_call_operand.hbm [shape: bf16[8,1024], index: 0, kind: input, shape index: {}]
  %s1 = inlined_call_operand.hbm [shape: bf16[1024,128], index: 1, kind: input, shape index: {}]
  %s2 = inlined_call_operand.hbm [shape: f32[128,128], index: 2, kind: input, shape index: {}]
  %s3 = inlined_call_operand.hbm [shape: f32[8,128], index: 3, kind: output, shape index: {}]
  %s4 = sld [smem:[#allocation0]]
  $region65: #{tpu_custom_call.1} parent=0
    _
  %s6 = ssub.s32 1, %s4
  %s7 = scalar_select 0, %s6, %s4
  $region1: #{tpu_custom_call.1} parent=0
    #allocation3 [shape = 'u8[16384]{0}', space=vmem, size = 0x4000, scoped, tag = 'input window, operand 0']
    #allocation4 [shape = 's32[2]{0}', space=sflag, size = 0x8, scoped, tag = 'scoped memory for tpu_custom_call.1']
    #allocation5 [shape = 's32[2]{0}', space=sflag, size = 0x8, scoped, tag = 'scoped memory for tpu_custom_call.1']
    #allocation6 [shape = 'u8[262144]{0}', space=vmem, size = 0x40000, scoped, tag = 'input window, operand 1']
    #allocation7 [shape = 's32[2]{0}', space=sflag, size = 0x8, scoped, tag = 'scoped memory for tpu_custom_call.1']
    #allocation8 [shape = 'u8[65536]{0}', space=vmem, size = 0x10000, scoped, tag = 'input window, operand 2, single buffered']
    #allocation9 [shape = 'u8[4096]{0}', space=vmem, size = 0x1000, scoped, tag = 'output window, operand 0, single buffered']
    %8 = vsyncpa [#allocation4], 0
    %s9 = scalar_lea.sflag [#allocation4], 1
    %10 = vsyncpa %s9, 0
    %11 = vsyncpa [#allocation7], 0
    %s12 = scalar_lea.sflag [#allocation7], 1
    %13 = vsyncpa %s12, 0
    %14 = vsyncpa [#allocation5], 0
    loop: start=0, step=1, limit=4
    $region2: #{tpu_custom_call.1} parent=1 // loop_pre_header
      _
    $region3: #{tpu_custom_call.1} parent=1 // loop_header
      %s16 = sphi 0, %s20
      %p17 = scmp.ge.s32.totalorder %s16, 4
      %s23 = sphi 0, %s35
      %s24 = sphi 0, %s31
      %s25 = sphi 0, %s23
      %s26 = sphi 0, %s24
      %s27 = sphi 0, %s25
      %s28 = sphi 0, %s26
      %s40 = sphi 0, %s42
      %s43 = sphi 0, %s40
      %s44 = sphi 0, %s43
      %s60 = sphi 0, %s44
      %s66 = sphi 0, %s68
      %s69 = sphi 0, %s66
      %s70 = sphi 0, %s69
      %s86 = sphi 0, %s70
      %s90 = sphi 0, %s90
      %s92 = sphi 0, %s90
      %s93 = sphi 0, %s92
      %s107 = sphi 0, %s93
      %s113 = sphi 0, %s115
      %s116 = sphi 0, %s113
      %s117 = sphi 0, %s116
      %s133 = sphi 0, %s117
    $region4: #{tpu_custom_call.1} parent=1 // loop_header_branch
      %19 = sbr.rel (%p17) target = $region8
    $region5: #{tpu_custom_call.1} parent=1 // loop_body
      %s21 = ssub.s32 %s16, 1
      %s22 = ssub.s32 %s16, 2
      %s29 = sadd.s32 1, %s24
      %p30 = scmp.ge.s32.totalorder %s29, 2
      %s31 = scalar_select %p30, 0, %s29
      %s32 = sadd.s32 1, %s23
      %s33 = scalar_select %p30, %s32, %s23
      %p34 = scmp.ge.s32.totalorder %s33, 1
      %s35 = scalar_select %p34, 0, %s33
      %s36 = ssub.s32 %s23, %s35
      %s37 = ssub.s32 %s24, %s31
      %s38 = sor.u32 %s36, %s37
      %p39 = scmp.eq.s32.totalorder %s38, 0
      %s41 = sadd.s32 %s40, 1
      %s42 = scalar_select %p39, %s40, %s41
      %p45 = pneg %p39
      %p46 = scmp.eq.s32.totalorder %s16, 1
      %p47 = por %p45, %p46
      %p48 = scmp.ne.s32.totalorder %s40, %s43
      %p49 = scmp.eq.s32.totalorder %s16, 0
      %p50 = por %p48, %p49
      %p51 = scmp.ne.s32.totalorder %s40, %s43
      %p52 = scmp.eq.s32.totalorder %s21, 1
      %p53 = por %p51, %p52
      %p54 = scmp.ne.s32.totalorder %s43, %s44
      %p55 = scmp.eq.s32.totalorder %s21, 0
      %p56 = por %p54, %p55
      %p57 = scmp.ne.s32.totalorder %s43, %s44
      %p58 = scmp.eq.s32.totalorder %s22, 1
      %p59 = por %p57, %p58
      %p61 = scmp.ne.s32.totalorder %s44, %s60
      %p62 = scmp.eq.s32.totalorder %s22, 0
      %p63 = por %p61, %p62
      %s64 = ssub.s32 %s24, %s31
      %p65 = scmp.eq.s32.totalorder %s64, 0
      %s67 = sadd.s32 %s66, 1
      %s68 = scalar_select %p65, %s66, %s67
      %p71 = pneg %p65
      %p72 = scmp.eq.s32.totalorder %s16, 1
      %p73 = por %p71, %p72
      %p74 = scmp.ne.s32.totalorder %s66, %s69
      %p75 = scmp.eq.s32.totalorder %s16, 0
      %p76 = por %p74, %p75
      %p77 = scmp.ne.s32.totalorder %s66, %s69
      %p78 = scmp.eq.s32.totalorder %s21, 1
      %p79 = por %p77, %p78
      %p80 = scmp.ne.s32.totalorder %s69, %s70
      %p81 = scmp.eq.s32.totalorder %s21, 0
      %p82 = por %p80, %p81
      %p83 = scmp.ne.s32.totalorder %s69, %s70
      %p84 = scmp.eq.s32.totalorder %s22, 1
      %p85 = por %p83, %p84
      %p87 = scmp.ne.s32.totalorder %s70, %s86
      %p88 = scmp.eq.s32.totalorder %s22, 0
      %p89 = por %p87, %p88
      %s91 = sadd.s32 %s90, 1
      %p94 = scmp.eq.s32.totalorder %s16, 1
      %p95 = scmp.ne.s32.totalorder %s90, %s92
      %p96 = scmp.eq.s32.totalorder %s16, 0
      %p97 = por %p95, %p96
      %p98 = scmp.ne.s32.totalorder %s90, %s92
      %p99 = scmp.eq.s32.totalorder %s21, 1
      %p100 = por %p98, %p99
      %p101 = scmp.ne.s32.totalorder %s92, %s93
      %p102 = scmp.eq.s32.totalorder %s21, 0
      %p103 = por %p101, %p102
      %p104 = scmp.ne.s32.totalorder %s92, %s93
      %p105 = scmp.eq.s32.totalorder %s22, 1
      %p106 = por %p104, %p105
      %p108 = scmp.ne.s32.totalorder %s93, %s107
      %p109 = scmp.eq.s32.totalorder %s22, 0
      %p110 = por %p108, %p109
      %s111 = ssub.s32 %s23, %s35
      %p112 = scmp.eq.s32.totalorder %s111, 0
      %s114 = sadd.s32 %s113, 1
      %s115 = scalar_select %p112, %s113, %s114
      %p118 = pneg %p112
      %p119 = scmp.eq.s32.totalorder %s16, 1
      %p120 = por %p118, %p119
      %p121 = scmp.ne.s32.totalorder %s113, %s116
      %p122 = scmp.eq.s32.totalorder %s16, 0
      %p123 = por %p121, %p122
      %p124 = scmp.ne.s32.totalorder %s113, %s116
      %p125 = scmp.eq.s32.totalorder %s21, 1
      %p126 = por %p124, %p125
      %p127 = scmp.ne.s32.totalorder %s116, %s117
      %p128 = scmp.eq.s32.totalorder %s21, 0
      %p129 = por %p127, %p128
      %p130 = scmp.ne.s32.totalorder %s116, %s117
      %p131 = scmp.eq.s32.totalorder %s22, 1
      %p132 = por %p130, %p131
      %p134 = scmp.ne.s32.totalorder %s117, %s133
      %p135 = scmp.eq.s32.totalorder %s22, 0
      %p136 = por %p134, %p135
      %p137 = scmp.le.s32.totalorder 1, %s16
      %p138 = scmp.lt.s32.totalorder %s16, 3
      %p139 = pnand %p137, %p138
      %p140 = pneg %p139
      // Predicated region
      $region9: #{tpu_custom_call.1} parent=5 // pred_check
        _
      $region10: #{tpu_custom_call.1} parent=5 // pred_check_branch
        %142 = sbr.rel (%p139) target = $region12
      $region11: #{tpu_custom_call.1} parent=5 // pred_region
        %s143 = ssub.s32 %s16, 1
        // Predicated region
        $region13: #{tpu_custom_call.1} parent=11 // pred_check
          %p144 = pneg %p103
        $region14: #{tpu_custom_call.1} parent=11 // pred_check_branch
          %146 = sbr.rel (%p144) target = $region16
        $region15: #{tpu_custom_call.1} parent=11 // pred_region
          %s148 = ssub.s32 2048, 2048
          %149 = vsyncadd [#allocation7], %s148
          %s150 = sshll.u32 [#allocation8], 4
          %s151 = int_to_ptr.vmem [resolvable:$true] %s150
          %156 = dma.hbm_to_vmem [thread:$0]  %s2, 2048, %s151, [#allocation7], 128, 128, 8
        $region16: #{tpu_custom_call.1} parent=11 // pred_fallthru
          _
      $region12: #{tpu_custom_call.1} parent=5 // pred_fallthru
        _
      %p157 = scmp.lt.s32.totalorder %s16, 2
      // Predicated region
      $region17: #{tpu_custom_call.1} parent=5 // pred_check
        %p158 = pneg %p157
      $region18: #{tpu_custom_call.1} parent=5 // pred_check_branch
        %160 = sbr.rel (%p158) target = $region20
      $region19: #{tpu_custom_call.1} parent=5 // pred_region
        // Predicated region
        $region21: #{tpu_custom_call.1} parent=19 // pred_check
          %p161 = pneg %p50
        $region22: #{tpu_custom_call.1} parent=19 // pred_check_branch
          %163 = sbr.rel (%p161) target = $region24
        $region23: #{tpu_custom_call.1} parent=19 // pred_region
          %s164 = sand.u32 %s40, 1
          %s165 = scalar_lea.sflag [#allocation4], %s164
          %s166 = sand.u32 %s40, 1
          %s167 = smul.addr %s166, 16
          %s168 = scalar_lea.vmem [#allocation3], %s167
          %s169 = smul.u32 4, %s24
          %s171 = ssub.s32 256, 256
          %172 = vsyncadd %s165, %s171
          %s173 = smul.addr %s23, 8
          %s174 = sadd.s32 %s169, %s173
          %s175 = smul.addr %s174, 64
          %s176 = scalar_lea.hbm %s0, %s175
          %s178 = sshll.u32 %s168, 4
          %s179 = int_to_ptr.vmem [resolvable:$true] %s178
          %181 = dma.hbm_to_vmem [thread:$0]  %s176, 256, %s179, %s165
        $region24: #{tpu_custom_call.1} parent=19 // pred_fallthru
          _
        // Predicated region
        $region25: #{tpu_custom_call.1} parent=19 // pred_check
          %p182 = pneg %p76
        $region26: #{tpu_custom_call.1} parent=19 // pred_check_branch
          %184 = sbr.rel (%p182) target = $region28
        $region27: #{tpu_custom_call.1} parent=19 // pred_region
          %s185 = sand.u32 %s16, 1
          %s186 = scalar_lea.sflag [#allocation7], %s185
          %s187 = sand.u32 %s66, 1
          %s188 = smul.addr %s187, 256
          %s189 = scalar_lea.vmem [#allocation6], %s188
          %s190 = smul.u32 64, %s24
          %s192 = ssub.s32 4096, 4096
          %193 = vsyncadd %s186, %s192
          %s194 = smul.addr %s190, 64
          %s195 = scalar_lea.hbm %s1, %s194
          %s196 = sshll.u32 %s189, 4
          %s197 = int_to_ptr.vmem [resolvable:$true] %s196
          %202 = dma.hbm_to_vmem [thread:$0]  %s195, 4096, %s197, %s186, 64, 64, 4
        $region28: #{tpu_custom_call.1} parent=19 // pred_fallthru
          _
      $region20: #{tpu_custom_call.1} parent=5 // pred_fallthru
        _
      %p203 = scmp.le.s32.totalorder 1, %s16
      %p204 = scmp.lt.s32.totalorder %s16, 3
      %p205 = pnand %p203, %p204
      %p206 = pneg %p205
      // Predicated region
      $region29: #{tpu_custom_call.1} parent=5 // pred_check
        _
      $region30: #{tpu_custom_call.1} parent=5 // pred_check_branch
        %208 = sbr.rel (%p205) target = $region32
      $region31: #{tpu_custom_call.1} parent=5 // pred_region
        %s209 = ssub.s32 %s16, 1
        %s210 = sand.u32 %s43, 1
        %s211 = scalar_lea.sflag [#allocation4], %s210
        %s212 = sand.u32 %s43, 1
        %s213 = smul.addr %s212, 16
        %s214 = scalar_lea.vmem [#allocation3], %s213
        // Predicated region
        $region33: #{tpu_custom_call.1} parent=31 // pred_check
          %p215 = pneg %p56
        $region34: #{tpu_custom_call.1} parent=31 // pred_check_branch
          %217 = sbr.rel (%p215) target = $region36
        $region35: #{tpu_custom_call.1} parent=31 // pred_region
          %218 = dma.done %s211, 256
        $region36: #{tpu_custom_call.1} parent=31 // pred_fallthru
          _
        %s219 = sand.u32 %s21, 1
        %s220 = scalar_lea.sflag [#allocation7], %s219
        %s221 = sand.u32 %s69, 1
        %s222 = smul.addr %s221, 256
        %s223 = scalar_lea.vmem [#allocation6], %s222
        // Predicated region
        $region37: #{tpu_custom_call.1} parent=31 // pred_check
          %p224 = pneg %p82
        $region38: #{tpu_custom_call.1} parent=31 // pred_check_branch
          %226 = sbr.rel (%p224) target = $region40
        $region39: #{tpu_custom_call.1} parent=31 // pred_region
          %227 = dma.done %s220, 4096
        $region40: #{tpu_custom_call.1} parent=31 // pred_fallthru
          _
        // Predicated region
        $region41: #{tpu_custom_call.1} parent=31 // pred_check
          %p228 = pneg %p103
        $region42: #{tpu_custom_call.1} parent=31 // pred_check_branch
          %230 = sbr.rel (%p228) target = $region44
        $region43: #{tpu_custom_call.1} parent=31 // pred_region
          %231 = dma.done [#allocation7], 2048
        $region44: #{tpu_custom_call.1} parent=31 // pred_fallthru
          _
        %s232 = sand.u32 %s43, 1
        %s233 = scalar_lea.sflag [#allocation4], %s232
        %s234 = sand.u32 %s43, 1
        %s235 = smul.addr %s234, 16
        %s236 = scalar_lea.vmem [#allocation3], %s235
        %p237 = pneg %p56
        %p238 = pneg %p53
        %s239 = sand.u32 %s21, 1
        %s240 = scalar_lea.sflag [#allocation7], %s239
        %s241 = sand.u32 %s69, 1
        %s242 = smul.addr %s241, 256
        %s243 = scalar_lea.vmem [#allocation6], %s242
        %p244 = pneg %p82
        %p245 = pneg %p79
        %p246 = pneg %p103
        %p247 = pneg %p100
        %p248 = pneg %p129
        %p249 = pneg %p126
        %s250 = smul.u32 4, %s26
        %s251 = smul.u32 64, %s26
        %p253 = scmp.eq.s32.totalorder %s26, 0
        // Predicated region
        $region45: #{tpu_custom_call.1} parent=31 // pred_check
          %p254 = pneg %p253
        $region46: #{tpu_custom_call.1} parent=31 // pred_check_branch
          %256 = sbr.rel (%p254) target = $region48
        $region47: #{tpu_custom_call.1} parent=31 // pred_region
          %257 = vst [vmem:[#allocation2] sm:$0xff] 0.0
        $region48: #{tpu_custom_call.1} parent=31 // pred_fallthru
          _
        %v258 = vld [vmem:[#allocation2] sm:$0xff]
        %v259 = vld [vmem:[%s214] sm:$0xff]
        %v260 = vld [vmem:[%s214 + $0x8] sm:$0xff]
        %v261 = vld [vmem:[%s223] sm:$0xf]
        %v262 = vld [vmem:[%s223 + $0x4] sm:$0xf]
        %v263 = vld [vmem:[%s223 + $0x8] sm:$0xf]
        %v264 = vld [vmem:[%s223 + $0xc] sm:$0xf]
        %v265 = vld [vmem:[%s223 + $0x10] sm:$0xf]
        %v266 = vld [vmem:[%s223 + $0x14] sm:$0xf]
        %v267 = vld [vmem:[%s223 + $0x18] sm:$0xf]
        %v268 = vld [vmem:[%s223 + $0x1c] sm:$0xf]
        %v269 = vld [vmem:[%s223 + $0x20] sm:$0xf]
        %v270 = vld [vmem:[%s223 + $0x24] sm:$0xf]
        %v271 = vld [vmem:[%s223 + $0x28] sm:$0xf]
        %v272 = vld [vmem:[%s223 + $0x2c] sm:$0xf]
        %v273 = vld [vmem:[%s223 + $0x30] sm:$0xf]
        %v274 = vld [vmem:[%s223 + $0x34] sm:$0xf]
        %v275 = vld [vmem:[%s223 + $0x38] sm:$0xf]
        %v276 = vld [vmem:[%s223 + $0x3c] sm:$0xf]
        %v277 = vld [vmem:[%s223 + $0x40] sm:$0xf]
        %v278 = vld [vmem:[%s223 + $0x44] sm:$0xf]
        %v279 = vld [vmem:[%s223 + $0x48] sm:$0xf]
        %v280 = vld [vmem:[%s223 + $0x4c] sm:$0xf]
        %v281 = vld [vmem:[%s223 + $0x50] sm:$0xf]
        %v282 = vld [vmem:[%s223 + $0x54] sm:$0xf]
        %v283 = vld [vmem:[%s223 + $0x58] sm:$0xf]
        %v284 = vld [vmem:[%s223 + $0x5c] sm:$0xf]
        %v285 = vld [vmem:[%s223 + $0x60] sm:$0xf]
        %v286 = vld [vmem:[%s223 + $0x64] sm:$0xf]
        %v287 = vld [vmem:[%s223 + $0x68] sm:$0xf]
        %v288 = vld [vmem:[%s223 + $0x6c] sm:$0xf]
        %v289 = vld [vmem:[%s223 + $0x70] sm:$0xf]
        %v290 = vld [vmem:[%s223 + $0x74] sm:$0xf]
        %v291 = vld [vmem:[%s223 + $0x78] sm:$0xf]
        %v292 = vld [vmem:[%s223 + $0x7c] sm:$0xf]
        %v293 = vld [vmem:[%s223 + $0x80] sm:$0xf]
        %v294 = vld [vmem:[%s223 + $0x84] sm:$0xf]
        %v295 = vld [vmem:[%s223 + $0x88] sm:$0xf]
        %v296 = vld [vmem:[%s223 + $0x8c] sm:$0xf]
        %v297 = vld [vmem:[%s223 + $0x90] sm:$0xf]
        %v298 = vld [vmem:[%s223 + $0x94] sm:$0xf]
        %v299 = vld [vmem:[%s223 + $0x98] sm:$0xf]
        %v300 = vld [vmem:[%s223 + $0x9c] sm:$0xf]
        %v301 = vld [vmem:[%s223 + $0xa0] sm:$0xf]
        %v302 = vld [vmem:[%s223 + $0xa4] sm:$0xf]
        %v303 = vld [vmem:[%s223 + $0xa8] sm:$0xf]
        %v304 = vld [vmem:[%s223 + $0xac] sm:$0xf]
        %v305 = vld [vmem:[%s223 + $0xb0] sm:$0xf]
        %v306 = vld [vmem:[%s223 + $0xb4] sm:$0xf]
        %v307 = vld [vmem:[%s223 + $0xb8] sm:$0xf]
        %v308 = vld [vmem:[%s223 + $0xbc] sm:$0xf]
        %v309 = vld [vmem:[%s223 + $0xc0] sm:$0xf]
        %v310 = vld [vmem:[%s223 + $0xc4] sm:$0xf]
        %v311 = vld [vmem:[%s223 + $0xc8] sm:$0xf]
        %v312 = vld [vmem:[%s223 + $0xcc] sm:$0xf]
        %v313 = vld [vmem:[%s223 + $0xd0] sm:$0xf]
        %v314 = vld [vmem:[%s223 + $0xd4] sm:$0xf]
        %v315 = vld [vmem:[%s223 + $0xd8] sm:$0xf]
        %v316 = vld [vmem:[%s223 + $0xdc] sm:$0xf]
        %v317 = vld [vmem:[%s223 + $0xe0] sm:$0xf]
        %v318 = vld [vmem:[%s223 + $0xe4] sm:$0xf]
        %v319 = vld [vmem:[%s223 + $0xe8] sm:$0xf]
        %v320 = vld [vmem:[%s223 + $0xec] sm:$0xf]
        %v321 = vld [vmem:[%s223 + $0xf0] sm:$0xf]
        %v322 = vld [vmem:[%s223 + $0xf4] sm:$0xf]
        %v323 = vld [vmem:[%s223 + $0xf8] sm:$0xf]
        %v324 = vld [vmem:[%s223 + $0xfc] sm:$0xf]
        %v327 = vunpack.c.l.b16 %v259
        %v328 = vunpack.c.h.b16 %v259
        %v329 = vunpack.c.l.b16 %v260
        %v330 = vunpack.c.h.b16 %v260
        %v331 = vpack.c.b16 %v327, %v327
        %v332 = vpack.c.b16 %v328, %v328
        %v333 = vpack.c.b16 %v329, %v329
        %v334 = vpack.c.b16 %v330, %v330
        %v403 = vunpack.c.l.b16 %v261
        %v404 = vunpack.c.l.b16 %v262
        %v405 = vunpack.c.l.b16 %v263
        %v406 = vunpack.c.l.b16 %v264
        %v407 = vunpack.c.l.b16 %v265
        %v408 = vunpack.c.l.b16 %v266
        %v409 = vunpack.c.l.b16 %v267
        %v410 = vunpack.c.l.b16 %v268
        %v411 = vunpack.c.l.b16 %v269
        %v412 = vunpack.c.l.b16 %v270
        %v413 = vunpack.c.l.b16 %v271
        %v414 = vunpack.c.l.b16 %v272
        %v415 = vunpack.c.l.b16 %v273
        %v416 = vunpack.c.l.b16 %v274
        %v417 = vunpack.c.l.b16 %v275
        %v418 = vunpack.c.l.b16 %v276
        %v419 = vunpack.c.l.b16 %v277
        %v420 = vunpack.c.l.b16 %v278
        %v421 = vunpack.c.l.b16 %v279
        %v422 = vunpack.c.l.b16 %v280
        %v423 = vunpack.c.l.b16 %v281
        %v424 = vunpack.c.l.b16 %v282
        %v425 = vunpack.c.l.b16 %v283
        %v426 = vunpack.c.l.b16 %v284
        %v427 = vunpack.c.l.b16 %v285
        %v428 = vunpack.c.l.b16 %v286
        %v429 = vunpack.c.l.b16 %v287
        %v430 = vunpack.c.l.b16 %v288
        %v431 = vunpack.c.l.b16 %v289
        %v432 = vunpack.c.l.b16 %v290
        %v433 = vunpack.c.l.b16 %v291
        %v434 = vunpack.c.l.b16 %v292
        %v435 = vunpack.c.l.b16 %v293
        %v436 = vunpack.c.l.b16 %v294
        %v437 = vunpack.c.l.b16 %v295
        %v438 = vunpack.c.l.b16 %v296
        %v439 = vunpack.c.l.b16 %v297
        %v440 = vunpack.c.l.b16 %v298
        %v441 = vunpack.c.l.b16 %v299
        %v442 = vunpack.c.l.b16 %v300
        %v443 = vunpack.c.l.b16 %v301
        %v444 = vunpack.c.l.b16 %v302
        %v445 = vunpack.c.l.b16 %v303
        %v446 = vunpack.c.l.b16 %v304
        %v447 = vunpack.c.l.b16 %v305
        %v448 = vunpack.c.l.b16 %v306
        %v449 = vunpack.c.l.b16 %v307
        %v450 = vunpack.c.l.b16 %v308
        %v451 = vunpack.c.l.b16 %v309
        %v452 = vunpack.c.l.b16 %v310
        %v453 = vunpack.c.l.b16 %v311
        %v454 = vunpack.c.l.b16 %v312
        %v455 = vunpack.c.l.b16 %v313
        %v456 = vunpack.c.l.b16 %v314
        %v457 = vunpack.c.l.b16 %v315
        %v458 = vunpack.c.l.b16 %v316
        %v459 = vunpack.c.l.b16 %v317
        %v460 = vunpack.c.l.b16 %v318
        %v461 = vunpack.c.l.b16 %v319
        %v462 = vunpack.c.l.b16 %v320
        %v463 = vunpack.c.l.b16 %v321
        %v464 = vunpack.c.l.b16 %v322
        %v465 = vunpack.c.l.b16 %v323
        %v466 = vunpack.c.l.b16 %v324
        %v467 = vpack.c.b16 %v404, %v403
        %v468 = vpack.c.b16 %v406, %v405
        %v469 = vpack.c.b16 %v408, %v407
        %v470 = vpack.c.b16 %v410, %v409
        %v471 = vpack.c.b16 %v412, %v411
        %v472 = vpack.c.b16 %v414, %v413
        %v473 = vpack.c.b16 %v416, %v415
        %v474 = vpack.c.b16 %v418, %v417
        %v475 = vpack.c.b16 %v420, %v419
        %v476 = vpack.c.b16 %v422, %v421
        %v477 = vpack.c.b16 %v424, %v423
        %v478 = vpack.c.b16 %v426, %v425
        %v479 = vpack.c.b16 %v428, %v427
        %v480 = vpack.c.b16 %v430, %v429
        %v481 = vpack.c.b16 %v432, %v431
        %v482 = vpack.c.b16 %v434, %v433
        %v483 = vpack.c.b16 %v436, %v435
        %v484 = vpack.c.b16 %v438, %v437
        %v485 = vpack.c.b16 %v440, %v439
        %v486 = vpack.c.b16 %v442, %v441
        %v487 = vpack.c.b16 %v444, %v443
        %v488 = vpack.c.b16 %v446, %v445
        %v489 = vpack.c.b16 %v448, %v447
        %v490 = vpack.c.b16 %v450, %v449
        %v491 = vpack.c.b16 %v452, %v451
        %v492 = vpack.c.b16 %v454, %v453
        %v493 = vpack.c.b16 %v456, %v455
        %v494 = vpack.c.b16 %v458, %v457
        %v495 = vpack.c.b16 %v460, %v459
        %v496 = vpack.c.b16 %v462, %v461
        %v497 = vpack.c.b16 %v464, %v463
        %v498 = vpack.c.b16 %v466, %v465
        %531 = vmatprep.subr.bf16.mxu0 0
        %532 = vmatpush1.bf16.msra.mxu0 %v467
        %533 = vmatprep.subr.bf16.mxu0 0
        %534 = vmatpush1.bf16.msra.mxu0 %v468
        %535 = vmatprep.subr.bf16.mxu0 0
        %536 = vmatpush1.bf16.msra.mxu0 %v469
        %537 = vmatprep.subr.bf16.mxu0 0
        %538 = vmatpush1.bf16.msra.mxu0 %v470
        %539 = vmatprep.subr.bf16.mxu0 0
        %540 = vmatpush1.bf16.msra.mxu0 %v471
        %541 = vmatprep.subr.bf16.mxu0 0
        %542 = vmatpush1.bf16.msra.mxu0 %v472
        %543 = vmatprep.subr.bf16.mxu0 0
        %544 = vmatpush1.bf16.msra.mxu0 %v473
        %545 = vmatprep.subr.bf16.mxu0 0
        %546 = vmatpush1.bf16.msra.mxu0 %v474
        %547 = vmatprep.subr.bf16.mxu0 0
        %548 = vmatpush1.bf16.msra.mxu0 %v475
        %549 = vmatprep.subr.bf16.mxu0 0
        %550 = vmatpush1.bf16.msra.mxu0 %v476
        %551 = vmatprep.subr.bf16.mxu0 0
        %552 = vmatpush1.bf16.msra.mxu0 %v477
        %553 = vmatprep.subr.bf16.mxu0 0
        %554 = vmatpush1.bf16.msra.mxu0 %v478
        %555 = vmatprep.subr.bf16.mxu0 0
        %556 = vmatpush1.bf16.msra.mxu0 %v479
        %557 = vmatprep.subr.bf16.mxu0 0
        %558 = vmatpush1.bf16.msra.mxu0 %v480
        %559 = vmatprep.subr.bf16.mxu0 0
        %560 = vmatpush1.bf16.msra.mxu0 %v481
        %561 = vmatprep.subr.bf16.mxu0 0
        %562 = vmatpush1.bf16.msra.mxu0 %v482
        %563 = vmatprep.mubr.bf16.mxu0 %v332
        %564 = vmatmul.mubr.bf16.gmra.mrb[0].mxu0 %v331
        %v565 = vpop.f32.mrb[0].mxu0
        %v566 = vadd.f32 0.0, %v565
        %v567 = vpop.f32.mrb[0].mxu0
        %v568 = vpop.f32.mrb[0].mxu0
        %v569 = vpop.f32.mrb[0].mxu0
        %570 = vdwg.mxu0
        %571 = vmatprep.subr.bf16.mxu0 0
        %572 = vmatpush1.bf16.msra.mxu0 %v483
        %573 = vmatprep.subr.bf16.mxu0 0
        %574 = vmatpush1.bf16.msra.mxu0 %v484
        %575 = vmatprep.subr.bf16.mxu0 0
        %576 = vmatpush1.bf16.msra.mxu0 %v485
        %577 = vmatprep.subr.bf16.mxu0 0
        %578 = vmatpush1.bf16.msra.mxu0 %v486
        %579 = vmatprep.subr.bf16.mxu0 0
        %580 = vmatpush1.bf16.msra.mxu0 %v487
        %581 = vmatprep.subr.bf16.mxu0 0
        %582 = vmatpush1.bf16.msra.mxu0 %v488
        %583 = vmatprep.subr.bf16.mxu0 0
        %584 = vmatpush1.bf16.msra.mxu0 %v489
        %585 = vmatprep.subr.bf16.mxu0 0
        %586 = vmatpush1.bf16.msra.mxu0 %v490
        %587 = vmatprep.subr.bf16.mxu0 0
        %588 = vmatpush1.bf16.msra.mxu0 %v491
        %589 = vmatprep.subr.bf16.mxu0 0
        %590 = vmatpush1.bf16.msra.mxu0 %v492
        %591 = vmatprep.subr.bf16.mxu0 0
        %592 = vmatpush1.bf16.msra.mxu0 %v493
        %593 = vmatprep.subr.bf16.mxu0 0
        %594 = vmatpush1.bf16.msra.mxu0 %v494
        %595 = vmatprep.subr.bf16.mxu0 0
        %596 = vmatpush1.bf16.msra.mxu0 %v495
        %597 = vmatprep.subr.bf16.mxu0 0
        %598 = vmatpush1.bf16.msra.mxu0 %v496
        %599 = vmatprep.subr.bf16.mxu0 0
        %600 = vmatpush1.bf16.msra.mxu0 %v497
        %601 = vmatprep.subr.bf16.mxu0 0
        %602 = vmatpush1.bf16.msra.mxu0 %v498
        %603 = vmatprep.mubr.bf16.mxu0 %v334
        %604 = vmatmul.mubr.bf16.gmra.mrb[0].mxu0 %v333
        %v605 = vpop.f32.mrb[0].mxu0
        %v606 = vadd.f32 %v566, %v605
        %v607 = vpop.f32.mrb[0].mxu0
        %v608 = vpop.f32.mrb[0].mxu0
        %v609 = vpop.f32.mrb[0].mxu0
        %610 = vdwg.mxu0
        %v611 = vadd.f32 %v258, %v606
        %612 = vst [vmem:[#allocation2] sm:$0xff] %v611
        %p613 = scmp.eq.s32.totalorder %s26, 1
        // Predicated region
        $region49: #{tpu_custom_call.1} parent=31 // pred_check
          %p614 = pneg %p613
        $region50: #{tpu_custom_call.1} parent=31 // pred_check_branch
          %616 = sbr.rel (%p614) target = $region52
        $region51: #{tpu_custom_call.1} parent=31 // pred_region
          %v617 = vld [vmem:[#allocation2] sm:$0xff]
          %v618 = vmul.f32 %v617, %v617
          %619 = vadd.xlane.f32.xlu0 %v618
          %v620 = vpop.xlane.xlu0 %619
          %v621 = vadd.f32 %v620, 1e-12
          %v622 = vrsqrt.pop %v621
          %v623 = vmul.f32 %v622, 100.0
          %v624 = vmul.f32 %v623, %v617
          %v625 = vld [vmem:[#allocation8] sm:$0xff]
          %v626 = vld [vmem:[#allocation8 + $0x8] sm:$0xff]
          %v627 = vld [vmem:[#allocation8 + $0x10] sm:$0xff]
          %v628 = vld [vmem:[#allocation8 + $0x18] sm:$0xff]
          %v629 = vld [vmem:[#allocation8 + $0x20] sm:$0xff]
          %v630 = vld [vmem:[#allocation8 + $0x28] sm:$0xff]
          %v631 = vld [vmem:[#allocation8 + $0x30] sm:$0xff]
          %v632 = vld [vmem:[#allocation8 + $0x38] sm:$0xff]
          %v633 = vld [vmem:[#allocation8 + $0x40] sm:$0xff]
          %v634 = vld [vmem:[#allocation8 + $0x48] sm:$0xff]
          %v635 = vld [vmem:[#allocation8 + $0x50] sm:$0xff]
          %v636 = vld [vmem:[#allocation8 + $0x58] sm:$0xff]
          %v637 = vld [vmem:[#allocation8 + $0x60] sm:$0xff]
          %v638 = vld [vmem:[#allocation8 + $0x68] sm:$0xff]
          %v639 = vld [vmem:[#allocation8 + $0x70] sm:$0xff]
          %v640 = vld [vmem:[#allocation8 + $0x78] sm:$0xff]
          %641 = vmatprep.subr.mxu0 0.0
          %642 = vmatpush1.msra.mxu0 %v625
          %643 = vmatprep.subr.mxu0 0.0
          %644 = vmatpush1.msra.mxu0 %v626
          %645 = vmatprep.subr.mxu0 0.0
          %646 = vmatpush1.msra.mxu0 %v627
          %647 = vmatprep.subr.mxu0 0.0
          %648 = vmatpush1.msra.mxu0 %v628
          %649 = vmatprep.subr.mxu0 0.0
          %650 = vmatpush1.msra.mxu0 %v629
          %651 = vmatprep.subr.mxu0 0.0
          %652 = vmatpush1.msra.mxu0 %v630
          %653 = vmatprep.subr.mxu0 0.0
          %654 = vmatpush1.msra.mxu0 %v631
          %655 = vmatprep.subr.mxu0 0.0
          %656 = vmatpush1.msra.mxu0 %v632
          %657 = vmatprep.subr.mxu0 0.0
          %658 = vmatpush1.msra.mxu0 %v633
          %659 = vmatprep.subr.mxu0 0.0
          %660 = vmatpush1.msra.mxu0 %v634
          %661 = vmatprep.subr.mxu0 0.0
          %662 = vmatpush1.msra.mxu0 %v635
          %663 = vmatprep.subr.mxu0 0.0
          %664 = vmatpush1.msra.mxu0 %v636
          %665 = vmatprep.subr.mxu0 0.0
          %666 = vmatpush1.msra.mxu0 %v637
          %667 = vmatprep.subr.mxu0 0.0
          %668 = vmatpush1.msra.mxu0 %v638
          %669 = vmatprep.subr.mxu0 0.0
          %670 = vmatpush1.msra.mxu0 %v639
          %671 = vmatprep.subr.mxu0 0.0
          %672 = vmatpush1.msra.mxu0 %v640
          %673 = vmatprep.subr.mxu0 0.0
          %674 = vmatpush1.msra.mxu0 0.0
          %675 = vmatprep.subr.mxu0 0.0
          %676 = vmatpush1.msra.mxu0 0.0
          %677 = vmatprep.subr.mxu0 0.0
          %678 = vmatpush1.msra.mxu0 0.0
          %679 = vmatprep.subr.mxu0 0.0
          %680 = vmatpush1.msra.mxu0 0.0
          %681 = vmatprep.subr.mxu0 0.0
          %682 = vmatpush1.msra.mxu0 0.0
          %683 = vmatprep.subr.mxu0 0.0
          %684 = vmatpush1.msra.mxu0 0.0
          %685 = vmatprep.subr.mxu0 0.0
          %686 = vmatpush1.msra.mxu0 0.0
          %687 = vmatprep.subr.mxu0 0.0
          %688 = vmatpush1.msra.mxu0 0.0
          %689 = vmatprep.subr.mxu0 0.0
          %690 = vmatpush1.msra.mxu0 0.0
          %691 = vmatprep.subr.mxu0 0.0
          %692 = vmatpush1.msra.mxu0 0.0
          %693 = vmatprep.subr.mxu0 0.0
          %694 = vmatpush1.msra.mxu0 0.0
          %695 = vmatprep.subr.mxu0 0.0
          %696 = vmatpush1.msra.mxu0 0.0
          %697 = vmatprep.subr.mxu0 0.0
          %698 = vmatpush1.msra.mxu0 0.0
          %699 = vmatprep.subr.mxu0 0.0
          %700 = vmatpush1.msra.mxu0 0.0
          %701 = vmatprep.subr.mxu0 0.0
          %702 = vmatpush1.msra.mxu0 0.0
          %703 = vmatprep.subr.mxu0 0.0
          %704 = vmatpush1.msra.mxu0 0.0
          %705 = vmatprep.mubr.f32.mxu0 0.0
          %706 = vmatmul.mubr.f32.gmra.mrb[0].mxu0 %v624
          %v707 = vpop.f32.mrb[0].mxu0
          %v708 = vadd.f32 0.0, %v707
          %v709 = vpop.f32.mrb[0].mxu0
          %710 = vdwg.mxu0
          %711 = vst [vmem:[#allocation9] sm:$0xff] %v708
        $region52: #{tpu_custom_call.1} parent=31 // pred_fallthru
          _
        // Predicated region
        $region53: #{tpu_custom_call.1} parent=31 // pred_check
          %p712 = pneg %p126
        $region54: #{tpu_custom_call.1} parent=31 // pred_check_branch
          %714 = sbr.rel (%p712) target = $region56
        $region55: #{tpu_custom_call.1} parent=31 // pred_region
          %s716 = ssub.s32 128, 128
          %717 = vsyncadd [#allocation5], %s716
          %s718 = smul.addr %s25, 128
          %s719 = scalar_lea.hbm %s3, %s718
          %s721 = sshll.u32 [#allocation9], 4
          %s722 = int_to_ptr.vmem [resolvable:$true] %s721
          %724 = dma.vmem_to_hbm [thread:$0]  %s722, 128, %s719, [#allocation5]
        $region56: #{tpu_custom_call.1} parent=31 // pred_fallthru
          _
        // Predicated region
        $region57: #{tpu_custom_call.1} parent=31 // pred_check
          %p725 = pneg %p126
        $region58: #{tpu_custom_call.1} parent=31 // pred_check_branch
          %727 = sbr.rel (%p725) target = $region60
        $region59: #{tpu_custom_call.1} parent=31 // pred_region
          %728 = dma.done [#allocation5], 128
        $region60: #{tpu_custom_call.1} parent=31 // pred_fallthru
          _
      $region32: #{tpu_custom_call.1} parent=5 // pred_fallthru
        _
      %p729 = scmp.le.s32.totalorder 2, %s16
      // Predicated region
      $region61: #{tpu_custom_call.1} parent=5 // pred_check
        %p730 = pneg %p729
      $region62: #{tpu_custom_call.1} parent=5 // pred_check_branch
        %732 = sbr.rel (%p730) target = $region64
      $region63: #{tpu_custom_call.1} parent=5 // pred_region
        %s733 = ssub.s32 %s16, 2
      $region64: #{tpu_custom_call.1} parent=5 // pred_fallthru
        _
    $region6: #{tpu_custom_call.1} parent=1 // loop_footer
      %s20 = sadd.s32 1, %s16
    $region7: #{tpu_custom_call.1} parent=1 // loop_footer_branch
      %15 = sbr.rel target = $region3
    $region8: #{tpu_custom_call.1} parent=1 // loop_exit
      _
    %734 = vsyncpa [#allocation4], 1
    %s735 = scalar_lea.sflag [#allocation4], 1
    %736 = vsyncpa %s735, 1
    %737 = vsyncpa [#allocation7], 1
    %s738 = scalar_lea.sflag [#allocation7], 1
    %739 = vsyncpa %s738, 1
    %740 = vsyncpa [#allocation5], 1
    %s741 = scalar_lea.sflag [#allocation5], 1
    %742 = vsyncpa %s741, 1

</llo_original>
